<compile_context>
chip_gen: v7x
topology: tpu7x:2x2x1
jax: 0.10.0
libtpu: 0.0.40
codegen_flags: <defaults>
</compile_context>

<pallas_src>
import functools

import numpy as np
import jax
import jax.numpy as jnp
from jax.experimental import pallas as pl
from jax.experimental.pallas import tpu as pltpu


def _middle_block_kernel(H, W, x_ref, w0_ref, b0_ref, w1_ref, b1_ref,
                         w2_ref, b2_ref, o_ref):
    HW = H * W
    eps = 1e-5
    inv_hw = 1.0 / HW

    # ---- 1x1 conv: (Cout, Cin) @ (Cin, HW) per-pixel channel matmul (MXU) ----
    x = x_ref[0]                                                    # (Cin, HW)
    t = jnp.dot(w0_ref[...], x, preferred_element_type=jnp.float32) + b0_ref[...]
    residual = t                                                    # (Cout, HW)

    # Validity masks along the flattened-pixel (lane) axis, shared by both convs.
    pos = jax.lax.broadcasted_iota(jnp.int32, (1, HW), 1)
    col = pos % W
    top_row = pos < W                 # source row would be -1   (dy == 0)
    bottom_row = pos >= HW - W        # source row would be H    (dy == 2)
    left_col = col == 0               # source col would be -1   (dx == 0)
    right_col = col == W - 1          # source col would be W    (dx == 2)

    def conv3x3_in_relu(y, w_ref, b_ref):
        # im2col: 9 rolled + edge-masked copies stacked on sublanes,
        # then a single (Cout, 9*C) @ (9*C, HW) MXU matmul.
        taps = []
        for dy in range(3):
            for dx in range(3):
                s = (dy - 1) * W + (dx - 1)          # flattened source offset
                # shifted[c, p] = y[c, p + s]  (wrapped lanes are always masked)
                p = y if s == 0 else pltpu.roll(y, (-s) % HW, axis=1)
                if dy == 0:
                    p = jnp.where(top_row, 0.0, p)
                elif dy == 2:
                    p = jnp.where(bottom_row, 0.0, p)
                if dx == 0:
                    p = jnp.where(left_col, 0.0, p)
                elif dx == 2:
                    p = jnp.where(right_col, 0.0, p)
                taps.append(p)
        slab = jnp.concatenate(taps, axis=0)                        # (9*C, HW)
        acc = jnp.dot(w_ref[...], slab,
                      preferred_element_type=jnp.float32) + b_ref[...]

        # InstanceNorm2d (affine=False, biased variance, eps=1e-5) + ReLU,
        # per channel over all H*W pixels of this sample; single-pass stats.
        ssum = jnp.sum(acc, axis=1, keepdims=True)                  # (Cout, 1)
        ssq = jnp.sum(acc * acc, axis=1, keepdims=True)
        mean = ssum * inv_hw
        var = jnp.maximum(ssq * inv_hw - mean * mean, 0.0)
        return jnp.maximum((acc - mean) * jax.lax.rsqrt(var + eps), 0.0)

    y = conv3x3_in_relu(t, w1_ref, b1_ref)
    y = conv3x3_in_relu(y, w2_ref, b2_ref)
    o_ref[0] = (y + residual).astype(o_ref.dtype)


def middle_block(x_nchw, params):
    """x_nchw: (N, Cin, H, W) float32 (PyTorch layout). Returns (N, Cout, H, W)."""
    w0, b0, w1, b1, w2, b2 = params
    N, Cin, H, W = x_nchw.shape
    Cout = w0.shape[0]
    HW = H * W

    x_flat = x_nchw.reshape(N, Cin, HW)                 # channels->sublanes, pixels->lanes
    kernel = functools.partial(_middle_block_kernel, H, W)

    out = pl.pallas_call(
        kernel,
        out_shape=jax.ShapeDtypeStruct((N, Cout, HW), x_nchw.dtype),
        grid=(N,),
        in_specs=[
            pl.BlockSpec((1, Cin, HW), lambda b: (b, 0, 0)),       # x
            pl.BlockSpec((Cout, Cin), lambda b: (0, 0)),           # w0 (1x1 conv)
            pl.BlockSpec((Cout, 1), lambda b: (0, 0)),             # b0
            pl.BlockSpec((Cout, 9 * Cout), lambda b: (0, 0)),      # w1 (im2col 3x3)
            pl.BlockSpec((Cout, 1), lambda b: (0, 0)),             # b1
            pl.BlockSpec((Cout, 9 * Cout), lambda b: (0, 0)),      # w2 (im2col 3x3)
            pl.BlockSpec((Cout, 1), lambda b: (0, 0)),             # b2
        ],
        out_specs=pl.BlockSpec((1, Cout, HW), lambda b: (b, 0, 0)),
        compiler_params=pltpu.CompilerParams(dimension_semantics=("parallel",)),
    )(x_flat, w0, b0.reshape(Cout, 1),
      w1.reshape(Cout, 9 * Cout), b1.reshape(Cout, 1),
      w2.reshape(Cout, 9 * Cout), b2.reshape(Cout, 1))

    return out.reshape(N, Cout, H, W)


def reference(x_nchw, params):
    """Pure-JAX reference mirroring the PyTorch forward (NCHW)."""
    w0, b0, w1, b1, w2, b2 = params
    Cout = w0.shape[0]

    t = jax.lax.conv_general_dilated(
        x_nchw, w0.reshape(Cout, -1, 1, 1), (1, 1), 'VALID',
        dimension_numbers=('NCHW', 'OIHW', 'NCHW')) + b0.reshape(1, Cout, 1, 1)

    def conv3(y, w, b):
        # w: (Cout, 9, Cin) with tap index 3*dy+dx  ->  OIHW (Cout, Cin, 3, 3)
        w_oihw = jnp.transpose(w.reshape(Cout, 3, 3, -1), (0, 3, 1, 2))
        return jax.lax.conv_general_dilated(
            y, w_oihw, (1, 1), 'SAME',
            dimension_numbers=('NCHW', 'OIHW', 'NCHW')) + b.reshape(1, Cout, 1, 1)

    def inorm_relu(y):
        mean = y.mean(axis=(2, 3), keepdims=True)
        var = ((y - mean) ** 2).mean(axis=(2, 3), keepdims=True)
        return jnp.maximum((y - mean) * jax.lax.rsqrt(var + 1e-5), 0.0)

    e = inorm_relu(conv3(t, w1, b1))
    e = inorm_relu(conv3(e, w2, b2))
    return e + t


# TODO(synk): nn.MaxPool2d(2) `downsample` is defined in __init__ but never used in
# forward(), so it is intentionally not implemented.

if __name__ == "__main__":
    key = jax.random.PRNGKey(0)
    N, Cin, H, W = 2, 4, 16, 16
    Cout = 8

    ks = jax.random.split(key, 7)
    x = jax.random.normal(ks[0], (N, Cin, H, W), jnp.float32)          # PyTorch NCHW
    w0 = jax.random.normal(ks[1], (Cout, Cin), jnp.float32) * 0.3      # 1x1 conv (O, I)
    b0 = jax.random.normal(ks[2], (Cout,), jnp.float32) * 0.1
    w1 = jax.random.normal(ks[3], (Cout, 9, Cout), jnp.float32) * 0.1  # [co, 3*dy+dx, ci]
    b1 = jax.random.normal(ks[4], (Cout,), jnp.float32) * 0.1
    w2 = jax.random.normal(ks[5], (Cout, 9, Cout), jnp.float32) * 0.1
    b2 = jax.random.normal(ks[6], (Cout,), jnp.float32) * 0.1
    params = (w0, b0, w1, b1, w2, b2)

    out = middle_block(x, params)
    out = jax.block_until_ready(out)

    ref = reference(x, params)
    np.testing.assert_allclose(np.asarray(out), np.asarray(ref), rtol=1e-4, atol=1e-4)

    print("KERNEL_OK")
</pallas_src>

<mosaic_0001>
module attributes {stable_mosaic.version = 11 : i64} {
  func.func @_middle_block_kernel(%arg0: i32, %arg1: memref<1x4x256xf32, #tpu.memory_space<vmem>>, %arg2: memref<8x4xf32, #tpu.memory_space<vmem>>, %arg3: memref<8x1xf32, #tpu.memory_space<vmem>>, %arg4: memref<8x72xf32, #tpu.memory_space<vmem>>, %arg5: memref<8x1xf32, #tpu.memory_space<vmem>>, %arg6: memref<8x72xf32, #tpu.memory_space<vmem>>, %arg7: memref<8x1xf32, #tpu.memory_space<vmem>>, %arg8: memref<1x8x256xf32, #tpu.memory_space<vmem>>) attributes {dimension_semantics = [#tpu.dimension_semantics<parallel>], iteration_bounds = array<i64: 2>, scalar_prefetch = 0 : i64, scratch_operands = 0 : i64, tpu.core_type = #tpu.core_type<tc>, window_params = [{transform_indices = @transform_0, window_bounds = array<i64: 1, 4, 256>}, {pipeline_mode = #tpu.pipeline_mode<synchronous>, transform_indices = @transform_1, window_bounds = array<i64: 8, 4>}, {pipeline_mode = #tpu.pipeline_mode<synchronous>, transform_indices = @transform_2, window_bounds = array<i64: 8, 1>}, {pipeline_mode = #tpu.pipeline_mode<synchronous>, transform_indices = @transform_3, window_bounds = array<i64: 8, 72>}, {pipeline_mode = #tpu.pipeline_mode<synchronous>, transform_indices = @transform_4, window_bounds = array<i64: 8, 1>}, {pipeline_mode = #tpu.pipeline_mode<synchronous>, transform_indices = @transform_5, window_bounds = array<i64: 8, 72>}, {pipeline_mode = #tpu.pipeline_mode<synchronous>, transform_indices = @transform_6, window_bounds = array<i64: 8, 1>}, {transform_indices = @transform_7, window_bounds = array<i64: 1, 8, 256>}]} {
    %c0 = arith.constant 0 : index
    %c0_0 = arith.constant 0 : index
    %c0_1 = arith.constant 0 : index
    %0 = vector.load %arg1[%c0, %c0_0, %c0_1] : memref<1x4x256xf32, #tpu.memory_space<vmem>>, vector<1x4x256xf32>
    %1 = vector.shape_cast %0 : vector<1x4x256xf32> to vector<4x256xf32>
    %c0_2 = arith.constant 0 : index
    %c0_3 = arith.constant 0 : index
    %2 = vector.load %arg2[%c0_2, %c0_3] : memref<8x4xf32, #tpu.memory_space<vmem>>, vector<8x4xf32>
    %cst = arith.constant dense<0.000000e+00> : vector<8x256xf32>
    %3 = tpu.matmul %2, %1, %cst {dimension_numbers = #tpu.dot_dimension_numbers<[1], [0], [0], [1], [0, 0, 1, 1], [], []>} : vector<8x4xf32>, vector<4x256xf32>, vector<8x256xf32> -> vector<8x256xf32>
    %c0_4 = arith.constant 0 : index
    %c0_5 = arith.constant 0 : index
    %4 = vector.load %arg3[%c0_4, %c0_5] : memref<8x1xf32, #tpu.memory_space<vmem>>, vector<8x1xf32>
    %5 = vector.broadcast %4 : vector<8x1xf32> to vector<8x256xf32>
    %6 = arith.addf %3, %5 : vector<8x256xf32>
    %7 = tpu.iota {dimensions = array<i32: 1>} : vector<1x256xi32>
    %c16_i32 = arith.constant 16 : i32
    %c0_i32 = arith.constant 0 : i32
    %8 = arith.cmpi eq, %c16_i32, %c0_i32 : i32
    %c1_i32 = arith.constant 1 : i32
    %9 = arith.select %8, %c1_i32, %c16_i32 : i32
    %10 = vector.broadcast %9 : i32 to vector<1x256xi32>
    %11 = arith.remsi %7, %10 : vector<1x256xi32>
    %c0_i32_6 = arith.constant 0 : i32
    %12 = vector.broadcast %c0_i32_6 : i32 to vector<1x256xi32>
    %13 = arith.cmpi ne, %11, %12 : vector<1x256xi32>
    %c0_i32_7 = arith.constant 0 : i32
    %14 = vector.broadcast %c0_i32_7 : i32 to vector<1x256xi32>
    %15 = arith.cmpi slt, %11, %14 : vector<1x256xi32>
    %c0_i32_8 = arith.constant 0 : i32
    %16 = arith.cmpi slt, %9, %c0_i32_8 : i32
    %17 = vector.broadcast %16 : i1 to vector<1x256xi1>
    %18 = vector.broadcast %17 : vector<1x256xi1> to vector<1x256xi1>
    %19 = arith.xori %15, %18 : vector<1x256xi1>
    %20 = arith.andi %19, %13 : vector<1x256xi1>
    %21 = vector.broadcast %9 : i32 to vector<1x256xi32>
    %22 = arith.addi %11, %21 : vector<1x256xi32>
    %23 = arith.select %20, %22, %11 : vector<1x256xi1>, vector<1x256xi32>
    %c16_i32_9 = arith.constant 16 : i32
    %24 = vector.broadcast %c16_i32_9 : i32 to vector<1x256xi32>
    %25 = arith.cmpi slt, %7, %24 : vector<1x256xi32>
    %c240_i32 = arith.constant 240 : i32
    %26 = vector.broadcast %c240_i32 : i32 to vector<1x256xi32>
    %27 = arith.cmpi sge, %7, %26 : vector<1x256xi32>
    %c0_i32_10 = arith.constant 0 : i32
    %28 = vector.broadcast %c0_i32_10 : i32 to vector<1x256xi32>
    %29 = arith.cmpi eq, %23, %28 : vector<1x256xi32>
    %c15_i32 = arith.constant 15 : i32
    %30 = vector.broadcast %c15_i32 : i32 to vector<1x256xi32>
    %31 = arith.cmpi eq, %23, %30 : vector<1x256xi32>
    %c17_i32 = arith.constant 17 : i32
    %32 = tpu.dynamic_rotate %6 by %c17_i32 dim 1 : vector<8x256xf32>, i32 -> vector<8x256xf32>
    %cst_11 = arith.constant 0.000000e+00 : f32
    %33 = vector.shape_cast %25 : vector<1x256xi1> to vector<1x256xi1>
    %34 = vector.broadcast %33 : vector<1x256xi1> to vector<8x256xi1>
    %35 = vector.broadcast %cst_11 : f32 to vector<8x256xf32>
    %36 = arith.select %34, %35, %32 : vector<8x256xi1>, vector<8x256xf32>
    %cst_12 = arith.constant 0.000000e+00 : f32
    %37 = vector.shape_cast %29 : vector<1x256xi1> to vector<1x256xi1>
    %38 = vector.broadcast %37 : vector<1x256xi1> to vector<8x256xi1>
    %39 = vector.broadcast %cst_12 : f32 to vector<8x256xf32>
    %40 = arith.select %38, %39, %36 : vector<8x256xi1>, vector<8x256xf32>
    %c16_i32_13 = arith.constant 16 : i32
    %41 = tpu.dynamic_rotate %6 by %c16_i32_13 dim 1 : vector<8x256xf32>, i32 -> vector<8x256xf32>
    %cst_14 = arith.constant 0.000000e+00 : f32
    %42 = vector.shape_cast %25 : vector<1x256xi1> to vector<1x256xi1>
    %43 = vector.broadcast %42 : vector<1x256xi1> to vector<8x256xi1>
    %44 = vector.broadcast %cst_14 : f32 to vector<8x256xf32>
    %45 = arith.select %43, %44, %41 : vector<8x256xi1>, vector<8x256xf32>
    %c15_i32_15 = arith.constant 15 : i32
    %46 = tpu.dynamic_rotate %6 by %c15_i32_15 dim 1 : vector<8x256xf32>, i32 -> vector<8x256xf32>
    %cst_16 = arith.constant 0.000000e+00 : f32
    %47 = vector.shape_cast %25 : vector<1x256xi1> to vector<1x256xi1>
    %48 = vector.broadcast %47 : vector<1x256xi1> to vector<8x256xi1>
    %49 = vector.broadcast %cst_16 : f32 to vector<8x256xf32>
    %50 = arith.select %48, %49, %46 : vector<8x256xi1>, vector<8x256xf32>
    %cst_17 = arith.constant 0.000000e+00 : f32
    %51 = vector.shape_cast %31 : vector<1x256xi1> to vector<1x256xi1>
    %52 = vector.broadcast %51 : vector<1x256xi1> to vector<8x256xi1>
    %53 = vector.broadcast %cst_17 : f32 to vector<8x256xf32>
    %54 = arith.select %52, %53, %50 : vector<8x256xi1>, vector<8x256xf32>
    %c1_i32_18 = arith.constant 1 : i32
    %55 = tpu.dynamic_rotate %6 by %c1_i32_18 dim 1 : vector<8x256xf32>, i32 -> vector<8x256xf32>
    %cst_19 = arith.constant 0.000000e+00 : f32
    %56 = vector.shape_cast %29 : vector<1x256xi1> to vector<1x256xi1>
    %57 = vector.broadcast %56 : vector<1x256xi1> to vector<8x256xi1>
    %58 = vector.broadcast %cst_19 : f32 to vector<8x256xf32>
    %59 = arith.select %57, %58, %55 : vector<8x256xi1>, vector<8x256xf32>
    %c255_i32 = arith.constant 255 : i32
    %60 = tpu.dynamic_rotate %6 by %c255_i32 dim 1 : vector<8x256xf32>, i32 -> vector<8x256xf32>
    %cst_20 = arith.constant 0.000000e+00 : f32
    %61 = vector.shape_cast %31 : vector<1x256xi1> to vector<1x256xi1>
    %62 = vector.broadcast %61 : vector<1x256xi1> to vector<8x256xi1>
    %63 = vector.broadcast %cst_20 : f32 to vector<8x256xf32>
    %64 = arith.select %62, %63, %60 : vector<8x256xi1>, vector<8x256xf32>
    %c241_i32 = arith.constant 241 : i32
    %65 = tpu.dynamic_rotate %6 by %c241_i32 dim 1 : vector<8x256xf32>, i32 -> vector<8x256xf32>
    %cst_21 = arith.constant 0.000000e+00 : f32
    %66 = vector.shape_cast %27 : vector<1x256xi1> to vector<1x256xi1>
    %67 = vector.broadcast %66 : vector<1x256xi1> to vector<8x256xi1>
    %68 = vector.broadcast %cst_21 : f32 to vector<8x256xf32>
    %69 = arith.select %67, %68, %65 : vector<8x256xi1>, vector<8x256xf32>
    %cst_22 = arith.constant 0.000000e+00 : f32
    %70 = vector.shape_cast %29 : vector<1x256xi1> to vector<1x256xi1>
    %71 = vector.broadcast %70 : vector<1x256xi1> to vector<8x256xi1>
    %72 = vector.broadcast %cst_22 : f32 to vector<8x256xf32>
    %73 = arith.select %71, %72, %69 : vector<8x256xi1>, vector<8x256xf32>
    %c240_i32_23 = arith.constant 240 : i32
    %74 = tpu.dynamic_rotate %6 by %c240_i32_23 dim 1 : vector<8x256xf32>, i32 -> vector<8x256xf32>
    %cst_24 = arith.constant 0.000000e+00 : f32
    %75 = vector.shape_cast %27 : vector<1x256xi1> to vector<1x256xi1>
    %76 = vector.broadcast %75 : vector<1x256xi1> to vector<8x256xi1>
    %77 = vector.broadcast %cst_24 : f32 to vector<8x256xf32>
    %78 = arith.select %76, %77, %74 : vector<8x256xi1>, vector<8x256xf32>
    %c239_i32 = arith.constant 239 : i32
    %79 = tpu.dynamic_rotate %6 by %c239_i32 dim 1 : vector<8x256xf32>, i32 -> vector<8x256xf32>
    %cst_25 = arith.constant 0.000000e+00 : f32
    %80 = vector.shape_cast %27 : vector<1x256xi1> to vector<1x256xi1>
    %81 = vector.broadcast %80 : vector<1x256xi1> to vector<8x256xi1>
    %82 = vector.broadcast %cst_25 : f32 to vector<8x256xf32>
    %83 = arith.select %81, %82, %79 : vector<8x256xi1>, vector<8x256xf32>
    %cst_26 = arith.constant 0.000000e+00 : f32
    %84 = vector.shape_cast %31 : vector<1x256xi1> to vector<1x256xi1>
    %85 = vector.broadcast %84 : vector<1x256xi1> to vector<8x256xi1>
    %86 = vector.broadcast %cst_26 : f32 to vector<8x256xf32>
    %87 = arith.select %85, %86, %83 : vector<8x256xi1>, vector<8x256xf32>
    %88 = tpu.concatenate %40, %45, %54, %59, %6, %64, %73, %78, %87 in 0 : vector<8x256xf32>, vector<8x256xf32>, vector<8x256xf32>, vector<8x256xf32>, vector<8x256xf32>, vector<8x256xf32>, vector<8x256xf32>, vector<8x256xf32>, vector<8x256xf32> -> vector<72x256xf32>
    %c0_27 = arith.constant 0 : index
    %c0_28 = arith.constant 0 : index
    %89 = vector.load %arg4[%c0_27, %c0_28] : memref<8x72xf32, #tpu.memory_space<vmem>>, vector<8x72xf32>
    %cst_29 = arith.constant dense<0.000000e+00> : vector<8x256xf32>
    %90 = tpu.matmul %89, %88, %cst_29 {dimension_numbers = #tpu.dot_dimension_numbers<[1], [0], [0], [1], [0, 0, 1, 1], [], []>} : vector<8x72xf32>, vector<72x256xf32>, vector<8x256xf32> -> vector<8x256xf32>
    %c0_30 = arith.constant 0 : index
    %c0_31 = arith.constant 0 : index
    %91 = vector.load %arg5[%c0_30, %c0_31] : memref<8x1xf32, #tpu.memory_space<vmem>>, vector<8x1xf32>
    %92 = vector.broadcast %91 : vector<8x1xf32> to vector<8x256xf32>
    %93 = arith.addf %90, %92 : vector<8x256xf32>
    %cst_32 = arith.constant dense<0.000000e+00> : vector<8xf32>
    %94 = vector.multi_reduction <add>, %93, %cst_32 [1] : vector<8x256xf32> to vector<8xf32>
    %95 = vector.shape_cast %94 : vector<8xf32> to vector<8x1xf32>
    %96 = arith.mulf %93, %93 : vector<8x256xf32>
    %cst_33 = arith.constant dense<0.000000e+00> : vector<8xf32>
    %97 = vector.multi_reduction <add>, %96, %cst_33 [1] : vector<8x256xf32> to vector<8xf32>
    %98 = vector.shape_cast %97 : vector<8xf32> to vector<8x1xf32>
    %cst_34 = arith.constant 3.906250e-03 : f32
    %99 = vector.broadcast %cst_34 : f32 to vector<8x1xf32>
    %100 = arith.mulf %95, %99 : vector<8x1xf32>
    %cst_35 = arith.constant 3.906250e-03 : f32
    %101 = vector.broadcast %cst_35 : f32 to vector<8x1xf32>
    %102 = arith.mulf %98, %101 : vector<8x1xf32>
    %103 = arith.mulf %100, %100 : vector<8x1xf32>
    %104 = arith.subf %102, %103 : vector<8x1xf32>
    %cst_36 = arith.constant 0.000000e+00 : f32
    %105 = vector.broadcast %cst_36 : f32 to vector<8x1xf32>
    %106 = arith.maximumf %104, %105 : vector<8x1xf32>
    %107 = vector.broadcast %100 : vector<8x1xf32> to vector<8x256xf32>
    %108 = arith.subf %93, %107 : vector<8x256xf32>
    %cst_37 = arith.constant 9.99999974E-6 : f32
    %109 = vector.broadcast %cst_37 : f32 to vector<8x1xf32>
    %110 = arith.addf %106, %109 : vector<8x1xf32>
    %111 = math.rsqrt %110 : vector<8x1xf32>
    %112 = vector.broadcast %111 : vector<8x1xf32> to vector<8x256xf32>
    %113 = arith.mulf %108, %112 : vector<8x256xf32>
    %cst_38 = arith.constant 0.000000e+00 : f32
    %114 = vector.broadcast %cst_38 : f32 to vector<8x256xf32>
    %115 = arith.maximumf %113, %114 : vector<8x256xf32>
    %c17_i32_39 = arith.constant 17 : i32
    %116 = tpu.dynamic_rotate %115 by %c17_i32_39 dim 1 : vector<8x256xf32>, i32 -> vector<8x256xf32>
    %cst_40 = arith.constant 0.000000e+00 : f32
    %117 = vector.shape_cast %25 : vector<1x256xi1> to vector<1x256xi1>
    %118 = vector.broadcast %117 : vector<1x256xi1> to vector<8x256xi1>
    %119 = vector.broadcast %cst_40 : f32 to vector<8x256xf32>
    %120 = arith.select %118, %119, %116 : vector<8x256xi1>, vector<8x256xf32>
    %cst_41 = arith.constant 0.000000e+00 : f32
    %121 = vector.shape_cast %29 : vector<1x256xi1> to vector<1x256xi1>
    %122 = vector.broadcast %121 : vector<1x256xi1> to vector<8x256xi1>
    %123 = vector.broadcast %cst_41 : f32 to vector<8x256xf32>
    %124 = arith.select %122, %123, %120 : vector<8x256xi1>, vector<8x256xf32>
    %c16_i32_42 = arith.constant 16 : i32
    %125 = tpu.dynamic_rotate %115 by %c16_i32_42 dim 1 : vector<8x256xf32>, i32 -> vector<8x256xf32>
    %cst_43 = arith.constant 0.000000e+00 : f32
    %126 = vector.shape_cast %25 : vector<1x256xi1> to vector<1x256xi1>
    %127 = vector.broadcast %126 : vector<1x256xi1> to vector<8x256xi1>
    %128 = vector.broadcast %cst_43 : f32 to vector<8x256xf32>
    %129 = arith.select %127, %128, %125 : vector<8x256xi1>, vector<8x256xf32>
    %c15_i32_44 = arith.constant 15 : i32
    %130 = tpu.dynamic_rotate %115 by %c15_i32_44 dim 1 : vector<8x256xf32>, i32 -> vector<8x256xf32>
    %cst_45 = arith.constant 0.000000e+00 : f32
    %131 = vector.shape_cast %25 : vector<1x256xi1> to vector<1x256xi1>
    %132 = vector.broadcast %131 : vector<1x256xi1> to vector<8x256xi1>
    %133 = vector.broadcast %cst_45 : f32 to vector<8x256xf32>
    %134 = arith.select %132, %133, %130 : vector<8x256xi1>, vector<8x256xf32>
    %cst_46 = arith.constant 0.000000e+00 : f32
    %135 = vector.shape_cast %31 : vector<1x256xi1> to vector<1x256xi1>
    %136 = vector.broadcast %135 : vector<1x256xi1> to vector<8x256xi1>
    %137 = vector.broadcast %cst_46 : f32 to vector<8x256xf32>
    %138 = arith.select %136, %137, %134 : vector<8x256xi1>, vector<8x256xf32>
    %c1_i32_47 = arith.constant 1 : i32
    %139 = tpu.dynamic_rotate %115 by %c1_i32_47 dim 1 : vector<8x256xf32>, i32 -> vector<8x256xf32>
    %cst_48 = arith.constant 0.000000e+00 : f32
    %140 = vector.shape_cast %29 : vector<1x256xi1> to vector<1x256xi1>
    %141 = vector.broadcast %140 : vector<1x256xi1> to vector<8x256xi1>
    %142 = vector.broadcast %cst_48 : f32 to vector<8x256xf32>
    %143 = arith.select %141, %142, %139 : vector<8x256xi1>, vector<8x256xf32>
    %c255_i32_49 = arith.constant 255 : i32
    %144 = tpu.dynamic_rotate %115 by %c255_i32_49 dim 1 : vector<8x256xf32>, i32 -> vector<8x256xf32>
    %cst_50 = arith.constant 0.000000e+00 : f32
    %145 = vector.shape_cast %31 : vector<1x256xi1> to vector<1x256xi1>
    %146 = vector.broadcast %145 : vector<1x256xi1> to vector<8x256xi1>
    %147 = vector.broadcast %cst_50 : f32 to vector<8x256xf32>
    %148 = arith.select %146, %147, %144 : vector<8x256xi1>, vector<8x256xf32>
    %c241_i32_51 = arith.constant 241 : i32
    %149 = tpu.dynamic_rotate %115 by %c241_i32_51 dim 1 : vector<8x256xf32>, i32 -> vector<8x256xf32>
    %cst_52 = arith.constant 0.000000e+00 : f32
    %150 = vector.shape_cast %27 : vector<1x256xi1> to vector<1x256xi1>
    %151 = vector.broadcast %150 : vector<1x256xi1> to vector<8x256xi1>
    %152 = vector.broadcast %cst_52 : f32 to vector<8x256xf32>
    %153 = arith.select %151, %152, %149 : vector<8x256xi1>, vector<8x256xf32>
    %cst_53 = arith.constant 0.000000e+00 : f32
    %154 = vector.shape_cast %29 : vector<1x256xi1> to vector<1x256xi1>
    %155 = vector.broadcast %154 : vector<1x256xi1> to vector<8x256xi1>
    %156 = vector.broadcast %cst_53 : f32 to vector<8x256xf32>
    %157 = arith.select %155, %156, %153 : vector<8x256xi1>, vector<8x256xf32>
    %c240_i32_54 = arith.constant 240 : i32
    %158 = tpu.dynamic_rotate %115 by %c240_i32_54 dim 1 : vector<8x256xf32>, i32 -> vector<8x256xf32>
    %cst_55 = arith.constant 0.000000e+00 : f32
    %159 = vector.shape_cast %27 : vector<1x256xi1> to vector<1x256xi1>
    %160 = vector.broadcast %159 : vector<1x256xi1> to vector<8x256xi1>
    %161 = vector.broadcast %cst_55 : f32 to vector<8x256xf32>
    %162 = arith.select %160, %161, %158 : vector<8x256xi1>, vector<8x256xf32>
    %c239_i32_56 = arith.constant 239 : i32
    %163 = tpu.dynamic_rotate %115 by %c239_i32_56 dim 1 : vector<8x256xf32>, i32 -> vector<8x256xf32>
    %cst_57 = arith.constant 0.000000e+00 : f32
    %164 = vector.shape_cast %27 : vector<1x256xi1> to vector<1x256xi1>
    %165 = vector.broadcast %164 : vector<1x256xi1> to vector<8x256xi1>
    %166 = vector.broadcast %cst_57 : f32 to vector<8x256xf32>
    %167 = arith.select %165, %166, %163 : vector<8x256xi1>, vector<8x256xf32>
    %cst_58 = arith.constant 0.000000e+00 : f32
    %168 = vector.shape_cast %31 : vector<1x256xi1> to vector<1x256xi1>
    %169 = vector.broadcast %168 : vector<1x256xi1> to vector<8x256xi1>
    %170 = vector.broadcast %cst_58 : f32 to vector<8x256xf32>
    %171 = arith.select %169, %170, %167 : vector<8x256xi1>, vector<8x256xf32>
    %172 = tpu.concatenate %124, %129, %138, %143, %115, %148, %157, %162, %171 in 0 : vector<8x256xf32>, vector<8x256xf32>, vector<8x256xf32>, vector<8x256xf32>, vector<8x256xf32>, vector<8x256xf32>, vector<8x256xf32>, vector<8x256xf32>, vector<8x256xf32> -> vector<72x256xf32>
    %c0_59 = arith.constant 0 : index
    %c0_60 = arith.constant 0 : index
    %173 = vector.load %arg6[%c0_59, %c0_60] : memref<8x72xf32, #tpu.memory_space<vmem>>, vector<8x72xf32>
    %cst_61 = arith.constant dense<0.000000e+00> : vector<8x256xf32>
    %174 = tpu.matmul %173, %172, %cst_61 {dimension_numbers = #tpu.dot_dimension_numbers<[1], [0], [0], [1], [0, 0, 1, 1], [], []>} : vector<8x72xf32>, vector<72x256xf32>, vector<8x256xf32> -> vector<8x256xf32>
    %c0_62 = arith.constant 0 : index
    %c0_63 = arith.constant 0 : index
    %175 = vector.load %arg7[%c0_62, %c0_63] : memref<8x1xf32, #tpu.memory_space<vmem>>, vector<8x1xf32>
    %176 = vector.broadcast %175 : vector<8x1xf32> to vector<8x256xf32>
    %177 = arith.addf %174, %176 : vector<8x256xf32>
    %cst_64 = arith.constant dense<0.000000e+00> : vector<8xf32>
    %178 = vector.multi_reduction <add>, %177, %cst_64 [1] : vector<8x256xf32> to vector<8xf32>
    %179 = vector.shape_cast %178 : vector<8xf32> to vector<8x1xf32>
    %180 = arith.mulf %177, %177 : vector<8x256xf32>
    %cst_65 = arith.constant dense<0.000000e+00> : vector<8xf32>
    %181 = vector.multi_reduction <add>, %180, %cst_65 [1] : vector<8x256xf32> to vector<8xf32>
    %182 = vector.shape_cast %181 : vector<8xf32> to vector<8x1xf32>
    %cst_66 = arith.constant 3.906250e-03 : f32
    %183 = vector.broadcast %cst_66 : f32 to vector<8x1xf32>
    %184 = arith.mulf %179, %183 : vector<8x1xf32>
    %cst_67 = arith.constant 3.906250e-03 : f32
    %185 = vector.broadcast %cst_67 : f32 to vector<8x1xf32>
    %186 = arith.mulf %182, %185 : vector<8x1xf32>
    %187 = arith.mulf %184, %184 : vector<8x1xf32>
    %188 = arith.subf %186, %187 : vector<8x1xf32>
    %cst_68 = arith.constant 0.000000e+00 : f32
    %189 = vector.broadcast %cst_68 : f32 to vector<8x1xf32>
    %190 = arith.maximumf %188, %189 : vector<8x1xf32>
    %191 = vector.broadcast %184 : vector<8x1xf32> to vector<8x256xf32>
    %192 = arith.subf %177, %191 : vector<8x256xf32>
    %cst_69 = arith.constant 9.99999974E-6 : f32
    %193 = vector.broadcast %cst_69 : f32 to vector<8x1xf32>
    %194 = arith.addf %190, %193 : vector<8x1xf32>
    %195 = math.rsqrt %194 : vector<8x1xf32>
    %196 = vector.broadcast %195 : vector<8x1xf32> to vector<8x256xf32>
    %197 = arith.mulf %192, %196 : vector<8x256xf32>
    %cst_70 = arith.constant 0.000000e+00 : f32
    %198 = vector.broadcast %cst_70 : f32 to vector<8x256xf32>
    %199 = arith.maximumf %197, %198 : vector<8x256xf32>
    %200 = arith.addf %199, %6 : vector<8x256xf32>
    %c0_71 = arith.constant 0 : index
    %c0_72 = arith.constant 0 : index
    %c0_73 = arith.constant 0 : index
    %201 = vector.load %arg8[%c0_71, %c0_72, %c0_73] : memref<1x8x256xf32, #tpu.memory_space<vmem>>, vector<1x8x256xf32>
    %202 = vector.shape_cast %201 : vector<1x8x256xf32> to vector<8x256xf32>
    %203 = vector.shape_cast %200 : vector<8x256xf32> to vector<1x8x256xf32>
    tpu.vector_store %arg8[%c0_71, %c0_72, %c0_73], %203 {strides = array<i32>} : memref<1x8x256xf32, #tpu.memory_space<vmem>>, vector<1x8x256xf32>,
    return
  }
  func.func @transform_0(%arg0: i32) -> (i32, i32, i32) {
    %c0_i32 = arith.constant 0 : i32
    %c0_i32_0 = arith.constant 0 : i32
    %c0_i32_1 = arith.constant 0 : i32
    return %arg0, %c0_i32, %c0_i32_0 : i32, i32, i32
  }
  func.func @transform_1(%arg0: i32) -> (i32, i32) {
    %c0_i32 = arith.constant 0 : i32
    %c0_i32_0 = arith.constant 0 : i32
    %c0_i32_1 = arith.constant 0 : i32
    return %c0_i32, %c0_i32_0 : i32, i32
  }
  func.func @transform_2(%arg0: i32) -> (i32, i32) {
    %c0_i32 = arith.constant 0 : i32
    %c0_i32_0 = arith.constant 0 : i32
    %c0_i32_1 = arith.constant 0 : i32
    return %c0_i32, %c0_i32_0 : i32, i32
  }
  func.func @transform_3(%arg0: i32) -> (i32, i32) {
    %c0_i32 = arith.constant 0 : i32
    %c0_i32_0 = arith.constant 0 : i32
    %c0_i32_1 = arith.constant 0 : i32
    return %c0_i32, %c0_i32_0 : i32, i32
  }
  func.func @transform_4(%arg0: i32) -> (i32, i32) {
    %c0_i32 = arith.constant 0 : i32
    %c0_i32_0 = arith.constant 0 : i32
    %c0_i32_1 = arith.constant 0 : i32
    return %c0_i32, %c0_i32_0 : i32, i32
  }
  func.func @transform_5(%arg0: i32) -> (i32, i32) {
    %c0_i32 = arith.constant 0 : i32
    %c0_i32_0 = arith.constant 0 : i32
    %c0_i32_1 = arith.constant 0 : i32
    return %c0_i32, %c0_i32_0 : i32, i32
  }
  func.func @transform_6(%arg0: i32) -> (i32, i32) {
    %c0_i32 = arith.constant 0 : i32
    %c0_i32_0 = arith.constant 0 : i32
    %c0_i32_1 = arith.constant 0 : i32
    return %c0_i32, %c0_i32_0 : i32, i32
  }
  func.func @transform_7(%arg0: i32) -> (i32, i32, i32) {
    %c0_i32 = arith.constant 0 : i32
    %c0_i32_0 = arith.constant 0 : i32
    %c0_i32_1 = arith.constant 0 : i32
    return %arg0, %c0_i32, %c0_i32_0 : i32, i32, i32
  }
}

</mosaic_0001>

<llo_original>
// kernel: tpu_custom_call.1
$region0: #{tpu_custom_call.1}
  #allocation0 [shape = 'u32[]', space=smem, size = 0x4, offset = 0x4, fixed_abs, tag = 'smem constant byte address 0x4 - core index']
  #allocation1 [shape = 'u32[144,128]{1,0:T(1,128)}', space=vmem, size = 0x12000, scoped, tag = 'internal scratch']
  %s0 = inlined_call_operand.vmem [shape: f32[2,4,256], index: 0, kind: input, shape index: {}]
  %s1 = inlined_call_operand.vmem [shape: f32[8,4], index: 1, kind: input, shape index: {}]
  %s2 = inlined_call_operand.vmem [shape: f32[8,1], index: 2, kind: input, shape index: {}]
  %s3 = inlined_call_operand.vmem [shape: f32[8,72], index: 3, kind: input, shape index: {}]
  %s4 = inlined_call_operand.vmem [shape: f32[8,1], index: 4, kind: input, shape index: {}]
  %s5 = inlined_call_operand.vmem [shape: f32[8,72], index: 5, kind: input, shape index: {}]
  %s6 = inlined_call_operand.vmem [shape: f32[8,1], index: 6, kind: input, shape index: {}]
  %s7 = inlined_call_operand.hbm [shape: f32[2,8,256], index: 7, kind: output, shape index: {}]
  %s8 = sld [smem:[#allocation0]]
  $region61: #{tpu_custom_call.1} parent=0
    _
  %s10 = ssub.s32 1, %s8
  %s11 = scalar_select 0, %s10, %s8
  $region1: #{tpu_custom_call.1} parent=0
    #allocation2 [shape = 'u8[16384]{0}', space=vmem, size = 0x4000, scoped, tag = 'output window, operand 0']
    #allocation3 [shape = 's32[2]{0}', space=sflag, size = 0x8, scoped, tag = 'scoped memory for tpu_custom_call.1']
    %12 = vsyncpa [#allocation3], 0
    %s13 = scalar_lea.sflag [#allocation3], 1
    %14 = vsyncpa %s13, 0
    loop: start=0, step=1, limit=4
    $region2: #{tpu_custom_call.1} parent=1 // loop_pre_header
      _
    $region3: #{tpu_custom_call.1} parent=1 // loop_header
      %s16 = sphi 0, %s20
      %p17 = scmp.ge.s32.totalorder %s16, 4
      %s26 = sphi 0, %s28
      %s29 = sphi 0, %s26
      %s30 = sphi 0, %s29
      %s46 = sphi 0, %s30
      %s50 = sphi 0, %s50
      %s52 = sphi 0, %s50
      %s53 = sphi 0, %s52
      %s67 = sphi 0, %s53
      %s71 = sphi 0, %s71
      %s73 = sphi 0, %s71
      %s74 = sphi 0, %s73
      %s88 = sphi 0, %s74
      %s92 = sphi 0, %s92
      %s94 = sphi 0, %s92
      %s95 = sphi 0, %s94
      %s109 = sphi 0, %s95
      %s113 = sphi 0, %s113
      %s115 = sphi 0, %s113
      %s116 = sphi 0, %s115
      %s130 = sphi 0, %s116
      %s134 = sphi 0, %s134
      %s136 = sphi 0, %s134
      %s137 = sphi 0, %s136
      %s151 = sphi 0, %s137
      %s155 = sphi 0, %s155
      %s157 = sphi 0, %s155
      %s158 = sphi 0, %s157
      %s172 = sphi 0, %s158
      %s178 = sphi 0, %s180
      %s181 = sphi 0, %s178
      %s182 = sphi 0, %s181
      %s198 = sphi 0, %s182
    $region4: #{tpu_custom_call.1} parent=1 // loop_header_branch
      %19 = sbr.rel (%p17) target = $region8
    $region5: #{tpu_custom_call.1} parent=1 // loop_body
      %s21 = ssub.s32 %s16, 1
      %s22 = ssub.s32 %s16, 2
      %s23 = sadd.s32 %s16, 1
      %s24 = ssub.s32 %s16, %s23
      %p25 = scmp.eq.s32.totalorder %s24, 0
      %s27 = sadd.s32 %s26, 1
      %s28 = scalar_select %p25, %s26, %s27
      %p31 = pneg %p25
      %p32 = scmp.eq.s32.totalorder %s16, 1
      %p33 = por %p31, %p32
      %p34 = scmp.ne.s32.totalorder %s26, %s29
      %p35 = scmp.eq.s32.totalorder %s16, 0
      %p36 = por %p34, %p35
      %p37 = scmp.ne.s32.totalorder %s26, %s29
      %p38 = scmp.eq.s32.totalorder %s21, 1
      %p39 = por %p37, %p38
      %p40 = scmp.ne.s32.totalorder %s29, %s30
      %p41 = scmp.eq.s32.totalorder %s21, 0
      %p42 = por %p40, %p41
      %p43 = scmp.ne.s32.totalorder %s29, %s30
      %p44 = scmp.eq.s32.totalorder %s22, 1
      %p45 = por %p43, %p44
      %p47 = scmp.ne.s32.totalorder %s30, %s46
      %p48 = scmp.eq.s32.totalorder %s22, 0
      %p49 = por %p47, %p48
      %s51 = sadd.s32 %s50, 1
      %p54 = scmp.eq.s32.totalorder %s16, 1
      %p55 = scmp.ne.s32.totalorder %s50, %s52
      %p56 = scmp.eq.s32.totalorder %s16, 0
      %p57 = por %p55, %p56
      %p58 = scmp.ne.s32.totalorder %s50, %s52
      %p59 = scmp.eq.s32.totalorder %s21, 1
      %p60 = por %p58, %p59
      %p61 = scmp.ne.s32.totalorder %s52, %s53
      %p62 = scmp.eq.s32.totalorder %s21, 0
      %p63 = por %p61, %p62
      %p64 = scmp.ne.s32.totalorder %s52, %s53
      %p65 = scmp.eq.s32.totalorder %s22, 1
      %p66 = por %p64, %p65
      %p68 = scmp.ne.s32.totalorder %s53, %s67
      %p69 = scmp.eq.s32.totalorder %s22, 0
      %p70 = por %p68, %p69
      %s72 = sadd.s32 %s71, 1
      %p75 = scmp.eq.s32.totalorder %s16, 1
      %p76 = scmp.ne.s32.totalorder %s71, %s73
      %p77 = scmp.eq.s32.totalorder %s16, 0
      %p78 = por %p76, %p77
      %p79 = scmp.ne.s32.totalorder %s71, %s73
      %p80 = scmp.eq.s32.totalorder %s21, 1
      %p81 = por %p79, %p80
      %p82 = scmp.ne.s32.totalorder %s73, %s74
      %p83 = scmp.eq.s32.totalorder %s21, 0
      %p84 = por %p82, %p83
      %p85 = scmp.ne.s32.totalorder %s73, %s74
      %p86 = scmp.eq.s32.totalorder %s22, 1
      %p87 = por %p85, %p86
      %p89 = scmp.ne.s32.totalorder %s74, %s88
      %p90 = scmp.eq.s32.totalorder %s22, 0
      %p91 = por %p89, %p90
      %s93 = sadd.s32 %s92, 1
      %p96 = scmp.eq.s32.totalorder %s16, 1
      %p97 = scmp.ne.s32.totalorder %s92, %s94
      %p98 = scmp.eq.s32.totalorder %s16, 0
      %p99 = por %p97, %p98
      %p100 = scmp.ne.s32.totalorder %s92, %s94
      %p101 = scmp.eq.s32.totalorder %s21, 1
      %p102 = por %p100, %p101
      %p103 = scmp.ne.s32.totalorder %s94, %s95
      %p104 = scmp.eq.s32.totalorder %s21, 0
      %p105 = por %p103, %p104
      %p106 = scmp.ne.s32.totalorder %s94, %s95
      %p107 = scmp.eq.s32.totalorder %s22, 1
      %p108 = por %p106, %p107
      %p110 = scmp.ne.s32.totalorder %s95, %s109
      %p111 = scmp.eq.s32.totalorder %s22, 0
      %p112 = por %p110, %p111
      %s114 = sadd.s32 %s113, 1
      %p117 = scmp.eq.s32.totalorder %s16, 1
      %p118 = scmp.ne.s32.totalorder %s113, %s115
      %p119 = scmp.eq.s32.totalorder %s16, 0
      %p120 = por %p118, %p119
      %p121 = scmp.ne.s32.totalorder %s113, %s115
      %p122 = scmp.eq.s32.totalorder %s21, 1
      %p123 = por %p121, %p122
      %p124 = scmp.ne.s32.totalorder %s115, %s116
      %p125 = scmp.eq.s32.totalorder %s21, 0
      %p126 = por %p124, %p125
      %p127 = scmp.ne.s32.totalorder %s115, %s116
      %p128 = scmp.eq.s32.totalorder %s22, 1
      %p129 = por %p127, %p128
      %p131 = scmp.ne.s32.totalorder %s116, %s130
      %p132 = scmp.eq.s32.totalorder %s22, 0
      %p133 = por %p131, %p132
      %s135 = sadd.s32 %s134, 1
      %p138 = scmp.eq.s32.totalorder %s16, 1
      %p139 = scmp.ne.s32.totalorder %s134, %s136
      %p140 = scmp.eq.s32.totalorder %s16, 0
      %p141 = por %p139, %p140
      %p142 = scmp.ne.s32.totalorder %s134, %s136
      %p143 = scmp.eq.s32.totalorder %s21, 1
      %p144 = por %p142, %p143
      %p145 = scmp.ne.s32.totalorder %s136, %s137
      %p146 = scmp.eq.s32.totalorder %s21, 0
      %p147 = por %p145, %p146
      %p148 = scmp.ne.s32.totalorder %s136, %s137
      %p149 = scmp.eq.s32.totalorder %s22, 1
      %p150 = por %p148, %p149
      %p152 = scmp.ne.s32.totalorder %s137, %s151
      %p153 = scmp.eq.s32.totalorder %s22, 0
      %p154 = por %p152, %p153
      %s156 = sadd.s32 %s155, 1
      %p159 = scmp.eq.s32.totalorder %s16, 1
      %p160 = scmp.ne.s32.totalorder %s155, %s157
      %p161 = scmp.eq.s32.totalorder %s16, 0
      %p162 = por %p160, %p161
      %p163 = scmp.ne.s32.totalorder %s155, %s157
      %p164 = scmp.eq.s32.totalorder %s21, 1
      %p165 = por %p163, %p164
      %p166 = scmp.ne.s32.totalorder %s157, %s158
      %p167 = scmp.eq.s32.totalorder %s21, 0
      %p168 = por %p166, %p167
      %p169 = scmp.ne.s32.totalorder %s157, %s158
      %p170 = scmp.eq.s32.totalorder %s22, 1
      %p171 = por %p169, %p170
      %p173 = scmp.ne.s32.totalorder %s158, %s172
      %p174 = scmp.eq.s32.totalorder %s22, 0
      %p175 = por %p173, %p174
      %s176 = ssub.s32 %s16, %s23
      %p177 = scmp.eq.s32.totalorder %s176, 0
      %s179 = sadd.s32 %s178, 1
      %s180 = scalar_select %p177, %s178, %s179
      %p183 = pneg %p177
      %p184 = scmp.eq.s32.totalorder %s16, 1
      %p185 = por %p183, %p184
      %p186 = scmp.ne.s32.totalorder %s178, %s181
      %p187 = scmp.eq.s32.totalorder %s16, 0
      %p188 = por %p186, %p187
      %p189 = scmp.ne.s32.totalorder %s178, %s181
      %p190 = scmp.eq.s32.totalorder %s21, 1
      %p191 = por %p189, %p190
      %p192 = scmp.ne.s32.totalorder %s181, %s182
      %p193 = scmp.eq.s32.totalorder %s21, 0
      %p194 = por %p192, %p193
      %p195 = scmp.ne.s32.totalorder %s181, %s182
      %p196 = scmp.eq.s32.totalorder %s22, 1
      %p197 = por %p195, %p196
      %p199 = scmp.ne.s32.totalorder %s182, %s198
      %p200 = scmp.eq.s32.totalorder %s22, 0
      %p201 = por %p199, %p200
      %p202 = scmp.le.s32.totalorder 1, %s16
      %p203 = scmp.lt.s32.totalorder %s16, 3
      %p204 = pnand %p202, %p203
      %p205 = pneg %p204
      // Predicated region
      $region9: #{tpu_custom_call.1} parent=5 // pred_check
        _
      $region10: #{tpu_custom_call.1} parent=5 // pred_check_branch
        %207 = sbr.rel (%p204) target = $region12
      $region11: #{tpu_custom_call.1} parent=5 // pred_region
        %s208 = ssub.s32 %s16, 1
        // Predicated region
        $region13: #{tpu_custom_call.1} parent=11 // pred_check
          %p209 = pneg %p63
        $region14: #{tpu_custom_call.1} parent=11 // pred_check_branch
          %211 = sbr.rel (%p209) target = $region16
        $region15: #{tpu_custom_call.1} parent=11 // pred_region
          _
        $region16: #{tpu_custom_call.1} parent=11 // pred_fallthru
          _
        // Predicated region
        $region17: #{tpu_custom_call.1} parent=11 // pred_check
          %p212 = pneg %p84
        $region18: #{tpu_custom_call.1} parent=11 // pred_check_branch
          %214 = sbr.rel (%p212) target = $region20
        $region19: #{tpu_custom_call.1} parent=11 // pred_region
          _
        $region20: #{tpu_custom_call.1} parent=11 // pred_fallthru
          _
        // Predicated region
        $region21: #{tpu_custom_call.1} parent=11 // pred_check
          %p215 = pneg %p105
        $region22: #{tpu_custom_call.1} parent=11 // pred_check_branch
          %217 = sbr.rel (%p215) target = $region24
        $region23: #{tpu_custom_call.1} parent=11 // pred_region
          _
        $region24: #{tpu_custom_call.1} parent=11 // pred_fallthru
          _
        // Predicated region
        $region25: #{tpu_custom_call.1} parent=11 // pred_check
          %p218 = pneg %p126
        $region26: #{tpu_custom_call.1} parent=11 // pred_check_branch
          %220 = sbr.rel (%p218) target = $region28
        $region27: #{tpu_custom_call.1} parent=11 // pred_region
          _
        $region28: #{tpu_custom_call.1} parent=11 // pred_fallthru
          _
        // Predicated region
        $region29: #{tpu_custom_call.1} parent=11 // pred_check
          %p221 = pneg %p147
        $region30: #{tpu_custom_call.1} parent=11 // pred_check_branch
          %223 = sbr.rel (%p221) target = $region32
        $region31: #{tpu_custom_call.1} parent=11 // pred_region
          _
        $region32: #{tpu_custom_call.1} parent=11 // pred_fallthru
          _
        // Predicated region
        $region33: #{tpu_custom_call.1} parent=11 // pred_check
          %p224 = pneg %p168
        $region34: #{tpu_custom_call.1} parent=11 // pred_check_branch
          %226 = sbr.rel (%p224) target = $region36
        $region35: #{tpu_custom_call.1} parent=11 // pred_region
          _
        $region36: #{tpu_custom_call.1} parent=11 // pred_fallthru
          _
      $region12: #{tpu_custom_call.1} parent=5 // pred_fallthru
        _
      %p227 = scmp.lt.s32.totalorder %s16, 2
      // Predicated region
      $region37: #{tpu_custom_call.1} parent=5 // pred_check
        %p228 = pneg %p227
      $region38: #{tpu_custom_call.1} parent=5 // pred_check_branch
        %230 = sbr.rel (%p228) target = $region40
      $region39: #{tpu_custom_call.1} parent=5 // pred_region
        // Predicated region
        $region41: #{tpu_custom_call.1} parent=39 // pred_check
          %p231 = pneg %p36
        $region42: #{tpu_custom_call.1} parent=39 // pred_check_branch
          %233 = sbr.rel (%p231) target = $region44
        $region43: #{tpu_custom_call.1} parent=39 // pred_region
          %p234 = scmp.lt.s32.totalorder %s16, 1
          %s235 = scalar_select %p234, %s16, 1
          %s236 = smul.addr %s235, 2
          %s237 = smul.addr %s236, 4
          %s238 = scalar_lea.vmem %s0, %s237
        $region44: #{tpu_custom_call.1} parent=39 // pred_fallthru
          _
      $region40: #{tpu_custom_call.1} parent=5 // pred_fallthru
        _
      %p239 = scmp.le.s32.totalorder 1, %s16
      %p240 = scmp.lt.s32.totalorder %s16, 3
      %p241 = pnand %p239, %p240
      %p242 = pneg %p241
      // Predicated region
      $region45: #{tpu_custom_call.1} parent=5 // pred_check
        _
      $region46: #{tpu_custom_call.1} parent=5 // pred_check_branch
        %244 = sbr.rel (%p241) target = $region48
      $region47: #{tpu_custom_call.1} parent=5 // pred_region
        %s245 = ssub.s32 %s16, 1
        %p246 = scmp.lt.s32.totalorder %s21, 1
        %s247 = scalar_select %p246, %s21, 1
        %s248 = smul.addr %s247, 2
        %s249 = smul.addr %s248, 4
        %s250 = scalar_lea.vmem %s0, %s249
        %p251 = pneg %p42
        %p252 = pneg %p39
        %p253 = pneg %p63
        %p254 = pneg %p60
        %p255 = pneg %p84
        %p256 = pneg %p81
        %p257 = pneg %p105
        %p258 = pneg %p102
        %p259 = pneg %p126
        %p260 = pneg %p123
        %p261 = pneg %p147
        %p262 = pneg %p144
        %p263 = pneg %p168
        %p264 = pneg %p165
        %p265 = pneg %p194
        %p266 = pneg %p191
        %s267 = sand.u32 %s181, 1
        %s268 = scalar_lea.sflag [#allocation3], %s267
        %s269 = sand.u32 %s181, 1
        %s270 = smul.addr %s269, 16
        %s271 = scalar_lea.vmem [#allocation2], %s270
        %p272 = scmp.lt.s32.totalorder %s21, 1
        %s273 = scalar_select %p272, %s21, 1
        %s274 = smul.addr %s273, 2
        %s275 = smul.addr %s274, 4
        %s276 = scalar_lea.vmem %s0, %s275
        %v277 = vld [vmem:[%s276] sm:$0xff]
        %v278 = vld [vmem:[%s1] sm:$0xff]
        %v279 = vld [vmem:[%s2] sm:$0xff]
        %281 = vset.pattern.permute.xlu0 0
        %282 = vperm.xlu0 %281, %v279
        %v283 = vpop.permute.xlu0 %282
        %v286 = vcombine.high %v277, %v277
        %vm287 = vcmask 31744
        %v289 = vsel %vm287, %v278, 0
        %vm291 = vcmask 1043456
        %v292 = vsel %vm291, %v277, 0
        %v294 = vsel %vm291, %v286, 0
        %296 = vmatprep.subr.mxu0 %v294
        %297 = vmatpush1.msra.mxu0 %v292
        %298 = vmatprep.subr.mxu0 0.0
        %299 = vmatpush1.msra.mxu0 0.0
        %300 = vmatprep.subr.mxu0 0.0
        %301 = vmatpush1.msra.mxu0 0.0
        %302 = vmatprep.subr.mxu0 0.0
        %303 = vmatpush1.msra.mxu0 0.0
        %304 = vmatprep.subr.mxu0 0.0
        %305 = vmatpush1.msra.mxu0 0.0
        %306 = vmatprep.subr.mxu0 0.0
        %307 = vmatpush1.msra.mxu0 0.0
        %308 = vmatprep.subr.mxu0 0.0
        %309 = vmatpush1.msra.mxu0 0.0
        %310 = vmatprep.subr.mxu0 0.0
        %311 = vmatpush1.msra.mxu0 0.0
        %312 = vmatprep.subr.mxu0 0.0
        %313 = vmatpush1.msra.mxu0 0.0
        %314 = vmatprep.subr.mxu0 0.0
        %315 = vmatpush1.msra.mxu0 0.0
        %316 = vmatprep.subr.mxu0 0.0
        %317 = vmatpush1.msra.mxu0 0.0
        %318 = vmatprep.subr.mxu0 0.0
        %319 = vmatpush1.msra.mxu0 0.0
        %320 = vmatprep.subr.mxu0 0.0
        %321 = vmatpush1.msra.mxu0 0.0
        %322 = vmatprep.subr.mxu0 0.0
        %323 = vmatpush1.msra.mxu0 0.0
        %324 = vmatprep.subr.mxu0 0.0
        %325 = vmatpush1.msra.mxu0 0.0
        %326 = vmatprep.subr.mxu0 0.0
        %327 = vmatpush1.msra.mxu0 0.0
        %328 = vmatprep.subr.mxu0 0.0
        %329 = vmatpush1.msra.mxu0 0.0
        %330 = vmatprep.subr.mxu0 0.0
        %331 = vmatpush1.msra.mxu0 0.0
        %332 = vmatprep.subr.mxu0 0.0
        %333 = vmatpush1.msra.mxu0 0.0
        %334 = vmatprep.subr.mxu0 0.0
        %335 = vmatpush1.msra.mxu0 0.0
        %336 = vmatprep.subr.mxu0 0.0
        %337 = vmatpush1.msra.mxu0 0.0
        %338 = vmatprep.subr.mxu0 0.0
        %339 = vmatpush1.msra.mxu0 0.0
        %340 = vmatprep.subr.mxu0 0.0
        %341 = vmatpush1.msra.mxu0 0.0
        %342 = vmatprep.subr.mxu0 0.0
        %343 = vmatpush1.msra.mxu0 0.0
        %344 = vmatprep.subr.mxu0 0.0
        %345 = vmatpush1.msra.mxu0 0.0
        %346 = vmatprep.subr.mxu0 0.0
        %347 = vmatpush1.msra.mxu0 0.0
        %348 = vmatprep.subr.mxu0 0.0
        %349 = vmatpush1.msra.mxu0 0.0
        %350 = vmatprep.subr.mxu0 0.0
        %351 = vmatpush1.msra.mxu0 0.0
        %352 = vmatprep.subr.mxu0 0.0
        %353 = vmatpush1.msra.mxu0 0.0
        %354 = vmatprep.subr.mxu0 0.0
        %355 = vmatpush1.msra.mxu0 0.0
        %356 = vmatprep.subr.mxu0 0.0
        %357 = vmatpush1.msra.mxu0 0.0
        %358 = vmatprep.subr.mxu0 0.0
        %359 = vmatpush1.msra.mxu0 0.0
        %360 = vmatprep.mubr.f32.mxu0 0.0
        %361 = vmatmul.mubr.f32.gmra.mrb[0].mxu0 %v289
        %v362 = vpop.f32.mrb[0].mxu0
        %v363 = vadd.f32 %v283, %v362
        %v364 = vpop.f32.mrb[0].mxu0
        %v365 = vadd.f32 %v283, %v364
        %366 = vdwg.mxu0
        %v367 = vlaneseq
        %v368 = vand.u32 %v367, 127
        %v369 = vadd.s32 %v368, 128
        %vm370 = vcmp.lt.s32.totalorder %v368, 0
        %v371 = vsub.s32 0, %v368
        %v372 = vsel %vm370, %v371, %v368
        %v373 = vshrl.u32 %v372, 4
        %v374 = vand.u32 %v372, 15
        %v375 = vsub.s32 0, %v374
        %v376 = vsel %vm370, %v375, %v374
        %vm377 = vcmp.lt.s32.totalorder %v369, 0
        %v378 = vsub.s32 0, %v369
        %v379 = vsel %vm377, %v378, %v369
        %v380 = vshrl.u32 %v379, 4
        %v381 = vand.u32 %v379, 15
        %v382 = vsub.s32 0, %v381
        %v383 = vsel %vm377, %v382, %v381
        %vm384 = vcmp.ne.s32.totalorder %v376, 0
        %vm385 = vcmp.ne.s32.totalorder %v383, 0
        %vm386 = vcmp.lt.s32.totalorder %v376, 0
        %vm387 = vcmp.lt.s32.totalorder %v383, 0
        %vm388 = vmand %vm386, %vm384
        %vm389 = vmand %vm387, %vm385
        %v390 = vadd.s32 %v376, 16
        %v391 = vadd.s32 %v383, 16
        %v392 = vsel %vm388, %v390, %v376
        %v393 = vsel %vm389, %v391, %v383
        %vm394 = vcmp.lt.s32.totalorder %v368, 16
        %vm395 = vcmp.lt.s32.totalorder %v369, 16
        %vm396 = vcmp.ge.s32.totalorder %v368, 240
        %vm397 = vcmp.ge.s32.totalorder %v369, 240
        %vm398 = vcmp.eq.s32.totalorder %v392, 0
        %vm399 = vcmp.eq.s32.totalorder %v393, 0
        %vm400 = vcmp.eq.s32.totalorder %v392, 15
        %vm401 = vcmp.eq.s32.totalorder %v393, 15
        %402 = vrot.lane.b32.xlu0 %v363, 17
        %v403 = vpop.permute.xlu0 %402
        %404 = vrot.lane.b32.xlu0 %v365, 17
        %v405 = vpop.permute.xlu0 %404
        %vm406 = vcmp.lt.s32.totalorder %v368, 17
        %v407 = vsel %vm406, %v403, %v405
        %v408 = vsel %vm406, %v405, %v403
        %v409 = vsel %vm394, 1, 0
        %v410 = vsel %vm395, 1, 0
        %vm411 = vcmp.eq.s32.totalorder %v409, 1
        %vm412 = vcmp.eq.s32.totalorder %v410, 1
        %v413 = vsel %vm411, 0.0, %v408
        %v414 = vsel %vm412, 0.0, %v407
        %v415 = vsel %vm398, 1, 0
        %v416 = vsel %vm399, 1, 0
        %vm417 = vcmp.eq.s32.totalorder %v415, 1
        %vm418 = vcmp.eq.s32.totalorder %v416, 1
        %v419 = vsel %vm417, 0.0, %v413
        %v420 = vsel %vm418, 0.0, %v414
        %421 = vrot.lane.b32.xlu0 %v363, 16
        %v422 = vpop.permute.xlu0 %421
        %423 = vrot.lane.b32.xlu0 %v365, 16
        %v424 = vpop.permute.xlu0 %423
        %v425 = vsel %vm394, %v422, %v424
        %v426 = vsel %vm394, %v424, %v422
        %v427 = vsel %vm411, 0.0, %v426
        %v428 = vsel %vm412, 0.0, %v425
        %429 = vrot.lane.b32.xlu0 %v363, 15
        %v430 = vpop.permute.xlu0 %429
        %431 = vrot.lane.b32.xlu0 %v365, 15
        %v432 = vpop.permute.xlu0 %431
        %vm433 = vcmp.lt.s32.totalorder %v368, 15
        %v434 = vsel %vm433, %v430, %v432
        %v435 = vsel %vm433, %v432, %v430
        %v436 = vsel %vm411, 0.0, %v435
        %v437 = vsel %vm412, 0.0, %v434
        %v438 = vsel %vm400, 1, 0
        %v439 = vsel %vm401, 1, 0
        %vm440 = vcmp.eq.s32.totalorder %v438, 1
        %vm441 = vcmp.eq.s32.totalorder %v439, 1
        %v442 = vsel %vm440, 0.0, %v436
        %v443 = vsel %vm441, 0.0, %v437
        %444 = vrot.lane.b32.xlu0 %v363, 1
        %v445 = vpop.permute.xlu0 %444
        %446 = vrot.lane.b32.xlu0 %v365, 1
        %v447 = vpop.permute.xlu0 %446
        %vm448 = vcmp.lt.s32.totalorder %v368, 1
        %v449 = vsel %vm448, %v445, %v447
        %v450 = vsel %vm448, %v447, %v445
        %v451 = vsel %vm417, 0.0, %v450
        %v452 = vsel %vm418, 0.0, %v449
        %453 = vrot.lane.b32.xlu0 %v363, 127
        %v454 = vpop.permute.xlu0 %453
        %455 = vrot.lane.b32.xlu0 %v365, 127
        %v456 = vpop.permute.xlu0 %455
        %vm457 = vcmp.lt.s32.totalorder %v368, 127
        %v458 = vsel %vm457, %v454, %v456
        %v459 = vsel %vm457, %v456, %v454
        %v460 = vsel %vm440, 0.0, %v458
        %v461 = vsel %vm441, 0.0, %v459
        %462 = vrot.lane.b32.xlu0 %v363, 113
        %v463 = vpop.permute.xlu0 %462
        %464 = vrot.lane.b32.xlu0 %v365, 113
        %v465 = vpop.permute.xlu0 %464
        %vm466 = vcmp.lt.s32.totalorder %v368, 113
        %v467 = vsel %vm466, %v463, %v465
        %v468 = vsel %vm466, %v465, %v463
        %v469 = vsel %vm396, 1, 0
        %v470 = vsel %vm397, 1, 0
        %vm471 = vcmp.eq.s32.totalorder %v469, 1
        %vm472 = vcmp.eq.s32.totalorder %v470, 1
        %v473 = vsel %vm471, 0.0, %v467
        %v474 = vsel %vm472, 0.0, %v468
        %v475 = vsel %vm417, 0.0, %v473
        %v476 = vsel %vm418, 0.0, %v474
        %477 = vrot.lane.b32.xlu0 %v363, 112
        %v478 = vpop.permute.xlu0 %477
        %479 = vrot.lane.b32.xlu0 %v365, 112
        %v480 = vpop.permute.xlu0 %479
        %vm481 = vcmp.lt.s32.totalorder %v368, 112
        %v482 = vsel %vm481, %v478, %v480
        %v483 = vsel %vm481, %v480, %v478
        %v484 = vsel %vm471, 0.0, %v482
        %v485 = vsel %vm472, 0.0, %v483
        %486 = vrot.lane.b32.xlu0 %v363, 111
        %v487 = vpop.permute.xlu0 %486
        %488 = vrot.lane.b32.xlu0 %v365, 111
        %v489 = vpop.permute.xlu0 %488
        %vm490 = vcmp.lt.s32.totalorder %v368, 111
        %v491 = vsel %vm490, %v487, %v489
        %v492 = vsel %vm490, %v489, %v487
        %v493 = vsel %vm471, 0.0, %v491
        %v494 = vsel %vm472, 0.0, %v492
        %v495 = vsel %vm440, 0.0, %v493
        %v496 = vsel %vm441, 0.0, %v494
        %v497 = vld [vmem:[%s3] sm:$0xff]
        %v498 = vld [vmem:[%s4] sm:$0xff]
        %500 = vset.pattern.permute.xlu0 0
        %501 = vperm.xlu0 %500, %v498
        %v502 = vpop.permute.xlu0 %501
        %vm504 = vcmask 588800
        %v506 = vsel %vm504, %v497, 0
        %508 = vmatprep.subr.mxu0 %v420
        %509 = vmatpush1.msra.mxu0 %v419
        %510 = vmatprep.subr.mxu0 %v428
        %511 = vmatpush1.msra.mxu0 %v427
        %512 = vmatprep.subr.mxu0 %v443
        %513 = vmatpush1.msra.mxu0 %v442
        %514 = vmatprep.subr.mxu0 %v452
        %515 = vmatpush1.msra.mxu0 %v451
        %516 = vmatprep.subr.mxu0 %v365
        %517 = vmatpush1.msra.mxu0 %v363
        %518 = vmatprep.subr.mxu0 %v461
        %519 = vmatpush1.msra.mxu0 %v460
        %520 = vmatprep.subr.mxu0 %v476
        %521 = vmatpush1.msra.mxu0 %v475
        %522 = vmatprep.subr.mxu0 %v485
        %523 = vmatpush1.msra.mxu0 %v484
        %524 = vmatprep.subr.mxu0 %v496
        %525 = vmatpush1.msra.mxu0 %v495
        %526 = vmatprep.subr.mxu0 0.0
        %527 = vmatpush1.msra.mxu0 0.0
        %528 = vmatprep.subr.mxu0 0.0
        %529 = vmatpush1.msra.mxu0 0.0
        %530 = vmatprep.subr.mxu0 0.0
        %531 = vmatpush1.msra.mxu0 0.0
        %532 = vmatprep.subr.mxu0 0.0
        %533 = vmatpush1.msra.mxu0 0.0
        %534 = vmatprep.subr.mxu0 0.0
        %535 = vmatpush1.msra.mxu0 0.0
        %536 = vmatprep.subr.mxu0 0.0
        %537 = vmatpush1.msra.mxu0 0.0
        %538 = vmatprep.subr.mxu0 0.0
        %539 = vmatpush1.msra.mxu0 0.0
        %540 = vmatprep.subr.mxu0 0.0
        %541 = vmatpush1.msra.mxu0 0.0
        %542 = vmatprep.subr.mxu0 0.0
        %543 = vmatpush1.msra.mxu0 0.0
        %544 = vmatprep.subr.mxu0 0.0
        %545 = vmatpush1.msra.mxu0 0.0
        %546 = vmatprep.subr.mxu0 0.0
        %547 = vmatpush1.msra.mxu0 0.0
        %548 = vmatprep.subr.mxu0 0.0
        %549 = vmatpush1.msra.mxu0 0.0
        %550 = vmatprep.subr.mxu0 0.0
        %551 = vmatpush1.msra.mxu0 0.0
        %552 = vmatprep.subr.mxu0 0.0
        %553 = vmatpush1.msra.mxu0 0.0
        %554 = vmatprep.subr.mxu0 0.0
        %555 = vmatpush1.msra.mxu0 0.0
        %556 = vmatprep.subr.mxu0 0.0
        %557 = vmatpush1.msra.mxu0 0.0
        %558 = vmatprep.subr.mxu0 0.0
        %559 = vmatpush1.msra.mxu0 0.0
        %560 = vmatprep.subr.mxu0 0.0
        %561 = vmatpush1.msra.mxu0 0.0
        %562 = vmatprep.subr.mxu0 0.0
        %563 = vmatpush1.msra.mxu0 0.0
        %564 = vmatprep.subr.mxu0 0.0
        %565 = vmatpush1.msra.mxu0 0.0
        %566 = vmatprep.subr.mxu0 0.0
        %567 = vmatpush1.msra.mxu0 0.0
        %568 = vmatprep.subr.mxu0 0.0
        %569 = vmatpush1.msra.mxu0 0.0
        %570 = vmatprep.subr.mxu0 0.0
        %571 = vmatpush1.msra.mxu0 0.0
        %572 = vmatprep.mubr.f32.mxu0 0.0
        %573 = vmatmul.mubr.f32.gmra.mrb[0].mxu0 %v506
        %v574 = vpop.f32.mrb[0].mxu0
        %v575 = vadd.f32 %v502, %v574
        %v576 = vpop.f32.mrb[0].mxu0
        %v577 = vadd.f32 %v502, %v576
        %578 = vdwg.mxu0
        %v579 = vadd.f32 %v575, %v577
        %580 = vadd.xlane.f32.xlu0 %v579
        %v581 = vpop.xlane.xlu0 %580
        %v582 = vmul.f32 %v575, %v575
        %v583 = vmul.f32 %v577, %v577
        %v584 = vadd.f32 %v582, %v583
        %585 = vadd.xlane.f32.xlu0 %v584
        %v586 = vpop.xlane.xlu0 %585
        %v587 = vmul.f32 %v581, 0.00390625
        %v588 = vmul.f32 %v586, 0.00390625
        %v589 = vmul.f32 %v587, %v587
        %v590 = vsub.f32 %v588, %v589
        %v591 = vmax.f32 %v590, 0.0
        %v592 = vsub.f32 %v575, %v587
        %v593 = vsub.f32 %v577, %v587
        %v594 = vadd.f32 %v591, 1e-05
        %v595 = vrsqrt.pop %v594
        %v596 = vmul.f32 %v592, %v595
        %v597 = vmul.f32 %v593, %v595
        %v598 = vmax.f32 %v596, 0.0
        %v599 = vmax.f32 %v597, 0.0
        %600 = vrot.lane.b32.xlu0 %v598, 17
        %v601 = vpop.permute.xlu0 %600
        %602 = vrot.lane.b32.xlu0 %v599, 17
        %v603 = vpop.permute.xlu0 %602
        %v604 = vsel %vm406, %v601, %v603
        %v605 = vsel %vm406, %v603, %v601
        %v606 = vsel %vm411, 0.0, %v605
        %v607 = vsel %vm412, 0.0, %v604
        %v608 = vsel %vm417, 0.0, %v606
        %v609 = vsel %vm418, 0.0, %v607
        %610 = vrot.lane.b32.xlu0 %v598, 16
        %v611 = vpop.permute.xlu0 %610
        %612 = vrot.lane.b32.xlu0 %v599, 16
        %v613 = vpop.permute.xlu0 %612
        %v614 = vsel %vm394, %v611, %v613
        %v615 = vsel %vm394, %v613, %v611
        %v616 = vsel %vm411, 0.0, %v615
        %v617 = vsel %vm412, 0.0, %v614
        %618 = vrot.lane.b32.xlu0 %v598, 15
        %v619 = vpop.permute.xlu0 %618
        %620 = vrot.lane.b32.xlu0 %v599, 15
        %v621 = vpop.permute.xlu0 %620
        %v622 = vsel %vm433, %v619, %v621
        %v623 = vsel %vm433, %v621, %v619
        %v624 = vsel %vm411, 0.0, %v623
        %v625 = vsel %vm412, 0.0, %v622
        %v626 = vsel %vm440, 0.0, %v624
        %v627 = vsel %vm441, 0.0, %v625
        %628 = vrot.lane.b32.xlu0 %v598, 1
        %v629 = vpop.permute.xlu0 %628
        %630 = vrot.lane.b32.xlu0 %v599, 1
        %v631 = vpop.permute.xlu0 %630
        %v632 = vsel %vm448, %v629, %v631
        %v633 = vsel %vm448, %v631, %v629
        %v634 = vsel %vm417, 0.0, %v633
        %v635 = vsel %vm418, 0.0, %v632
        %636 = vrot.lane.b32.xlu0 %v598, 127
        %v637 = vpop.permute.xlu0 %636
        %638 = vrot.lane.b32.xlu0 %v599, 127
        %v639 = vpop.permute.xlu0 %638
        %v640 = vsel %vm457, %v637, %v639
        %v641 = vsel %vm457, %v639, %v637
        %v642 = vsel %vm440, 0.0, %v640
        %v643 = vsel %vm441, 0.0, %v641
        %644 = vrot.lane.b32.xlu0 %v598, 113
        %v645 = vpop.permute.xlu0 %644
        %646 = vrot.lane.b32.xlu0 %v599, 113
        %v647 = vpop.permute.xlu0 %646
        %v648 = vsel %vm466, %v645, %v647
        %v649 = vsel %vm466, %v647, %v645
        %v650 = vsel %vm471, 0.0, %v648
        %v651 = vsel %vm472, 0.0, %v649
        %v652 = vsel %vm417, 0.0, %v650
        %v653 = vsel %vm418, 0.0, %v651
        %654 = vrot.lane.b32.xlu0 %v598, 112
        %v655 = vpop.permute.xlu0 %654
        %656 = vrot.lane.b32.xlu0 %v599, 112
        %v657 = vpop.permute.xlu0 %656
        %v658 = vsel %vm481, %v655, %v657
        %v659 = vsel %vm481, %v657, %v655
        %v660 = vsel %vm471, 0.0, %v658
        %v661 = vsel %vm472, 0.0, %v659
        %662 = vrot.lane.b32.xlu0 %v598, 111
        %v663 = vpop.permute.xlu0 %662
        %664 = vrot.lane.b32.xlu0 %v599, 111
        %v665 = vpop.permute.xlu0 %664
        %v666 = vsel %vm490, %v663, %v665
        %v667 = vsel %vm490, %v665, %v663
        %v668 = vsel %vm471, 0.0, %v666
        %v669 = vsel %vm472, 0.0, %v667
        %v670 = vsel %vm440, 0.0, %v668
        %v671 = vsel %vm441, 0.0, %v669
        %v672 = vld [vmem:[%s5] sm:$0xff]
        %v673 = vld [vmem:[%s6] sm:$0xff]
        %675 = vset.pattern.permute.xlu0 0
        %676 = vperm.xlu0 %675, %v673
        %v677 = vpop.permute.xlu0 %676
        %v680 = vsel %vm504, %v672, 0
        %682 = vmatprep.subr.mxu0 %v609
        %683 = vmatpush1.msra.mxu0 %v608
        %684 = vmatprep.subr.mxu0 %v617
        %685 = vmatpush1.msra.mxu0 %v616
        %686 = vmatprep.subr.mxu0 %v627
        %687 = vmatpush1.msra.mxu0 %v626
        %688 = vmatprep.subr.mxu0 %v635
        %689 = vmatpush1.msra.mxu0 %v634
        %690 = vmatprep.subr.mxu0 %v599
        %691 = vmatpush1.msra.mxu0 %v598
        %692 = vmatprep.subr.mxu0 %v643
        %693 = vmatpush1.msra.mxu0 %v642
        %694 = vmatprep.subr.mxu0 %v653
        %695 = vmatpush1.msra.mxu0 %v652
        %696 = vmatprep.subr.mxu0 %v661
        %697 = vmatpush1.msra.mxu0 %v660
        %698 = vmatprep.subr.mxu0 %v671
        %699 = vmatpush1.msra.mxu0 %v670
        %700 = vmatprep.subr.mxu0 0.0
        %701 = vmatpush1.msra.mxu0 0.0
        %702 = vmatprep.subr.mxu0 0.0
        %703 = vmatpush1.msra.mxu0 0.0
        %704 = vmatprep.subr.mxu0 0.0
        %705 = vmatpush1.msra.mxu0 0.0
        %706 = vmatprep.subr.mxu0 0.0
        %707 = vmatpush1.msra.mxu0 0.0
        %708 = vmatprep.subr.mxu0 0.0
        %709 = vmatpush1.msra.mxu0 0.0
        %710 = vmatprep.subr.mxu0 0.0
        %711 = vmatpush1.msra.mxu0 0.0
        %712 = vmatprep.subr.mxu0 0.0
        %713 = vmatpush1.msra.mxu0 0.0
        %714 = vmatprep.subr.mxu0 0.0
        %715 = vmatpush1.msra.mxu0 0.0
        %716 = vmatprep.subr.mxu0 0.0
        %717 = vmatpush1.msra.mxu0 0.0
        %718 = vmatprep.subr.mxu0 0.0
        %719 = vmatpush1.msra.mxu0 0.0
        %720 = vmatprep.subr.mxu0 0.0
        %721 = vmatpush1.msra.mxu0 0.0
        %722 = vmatprep.subr.mxu0 0.0
        %723 = vmatpush1.msra.mxu0 0.0
        %724 = vmatprep.subr.mxu0 0.0
        %725 = vmatpush1.msra.mxu0 0.0
        %726 = vmatprep.subr.mxu0 0.0
        %727 = vmatpush1.msra.mxu0 0.0
        %728 = vmatprep.subr.mxu0 0.0
        %729 = vmatpush1.msra.mxu0 0.0
        %730 = vmatprep.subr.mxu0 0.0
        %731 = vmatpush1.msra.mxu0 0.0
        %732 = vmatprep.subr.mxu0 0.0
        %733 = vmatpush1.msra.mxu0 0.0
        %734 = vmatprep.subr.mxu0 0.0
        %735 = vmatpush1.msra.mxu0 0.0
        %736 = vmatprep.subr.mxu0 0.0
        %737 = vmatpush1.msra.mxu0 0.0
        %738 = vmatprep.subr.mxu0 0.0
        %739 = vmatpush1.msra.mxu0 0.0
        %740 = vmatprep.subr.mxu0 0.0
        %741 = vmatpush1.msra.mxu0 0.0
        %742 = vmatprep.subr.mxu0 0.0
        %743 = vmatpush1.msra.mxu0 0.0
        %744 = vmatprep.subr.mxu0 0.0
        %745 = vmatpush1.msra.mxu0 0.0
        %746 = vmatprep.mubr.f32.mxu0 0.0
        %747 = vmatmul.mubr.f32.gmra.mrb[0].mxu0 %v680
        %v748 = vpop.f32.mrb[0].mxu0
        %v749 = vadd.f32 %v677, %v748
        %v750 = vpop.f32.mrb[0].mxu0
        %v751 = vadd.f32 %v677, %v750
        %752 = vdwg.mxu0
        %v753 = vadd.f32 %v749, %v751
        %754 = vadd.xlane.f32.xlu0 %v753
        %v755 = vpop.xlane.xlu0 %754
        %v756 = vmul.f32 %v749, %v749
        %v757 = vmul.f32 %v751, %v751
        %v758 = vadd.f32 %v756, %v757
        %759 = vadd.xlane.f32.xlu0 %v758
        %v760 = vpop.xlane.xlu0 %759
        %v761 = vmul.f32 %v755, 0.00390625
        %v762 = vmul.f32 %v760, 0.00390625
        %v763 = vmul.f32 %v761, %v761
        %v764 = vsub.f32 %v762, %v763
        %v765 = vmax.f32 %v764, 0.0
        %v766 = vsub.f32 %v749, %v761
        %v767 = vsub.f32 %v751, %v761
        %v768 = vadd.f32 %v765, 1e-05
        %v769 = vrsqrt.pop %v768
        %v770 = vmul.f32 %v766, %v769
        %v771 = vmul.f32 %v767, %v769
        %v772 = vmax.f32 %v770, 0.0
        %v773 = vmax.f32 %v771, 0.0
        %v774 = vadd.f32 %v772, %v363
        %v775 = vadd.f32 %v773, %v365
        %776 = vst [vmem:[%s271] sm:$0xff] %v774
        %777 = vst [vmem:[%s271 + $0x8] sm:$0xff] %v775
        %s778 = sand.u32 %s181, 1
        %s779 = scalar_lea.sflag [#allocation3], %s778
        %s780 = sand.u32 %s181, 1
        %s781 = smul.addr %s780, 16
        %s782 = scalar_lea.vmem [#allocation2], %s781
        // Predicated region
        $region49: #{tpu_custom_call.1} parent=47 // pred_check
          %p783 = pneg %p191
        $region50: #{tpu_custom_call.1} parent=47 // pred_check_branch
          %785 = sbr.rel (%p783) target = $region52
        $region51: #{tpu_custom_call.1} parent=47 // pred_region
          %s787 = ssub.s32 256, 256
          %788 = vsyncadd %s779, %s787
          %s789 = smul.addr %s21, 2
          %s790 = smul.addr %s789, 128
          %s791 = scalar_lea.hbm %s7, %s790
          %s793 = sshll.u32 %s782, 4
          %s794 = int_to_ptr.vmem [resolvable:$true] %s793
          %796 = dma.vmem_to_hbm [thread:$0]  %s794, 256, %s791, %s779
        $region52: #{tpu_custom_call.1} parent=47 // pred_fallthru
          _
      $region48: #{tpu_custom_call.1} parent=5 // pred_fallthru
        _
      %p797 = scmp.le.s32.totalorder 2, %s16
      // Predicated region
      $region53: #{tpu_custom_call.1} parent=5 // pred_check
        %p798 = pneg %p797
      $region54: #{tpu_custom_call.1} parent=5 // pred_check_branch
        %800 = sbr.rel (%p798) target = $region56
      $region55: #{tpu_custom_call.1} parent=5 // pred_region
        %s801 = ssub.s32 %s16, 2
        // Predicated region
        $region57: #{tpu_custom_call.1} parent=55 // pred_check
          %p802 = pneg %p197
        $region58: #{tpu_custom_call.1} parent=55 // pred_check_branch
          %804 = sbr.rel (%p802) target = $region60
        $region59: #{tpu_custom_call.1} parent=55 // pred_region
          %s805 = sand.u32 %s182, 1
          %s806 = scalar_lea.sflag [#allocation3], %s805
          %s807 = sand.u32 %s182, 1
          %s808 = smul.addr %s807, 16
          %s809 = scalar_lea.vmem [#allocation2], %s808
          %810 = dma.done %s806, 256
        $region60: #{tpu_custom_call.1} parent=55 // pred_fallthru
          _
      $region56: #{tpu_custom_call.1} parent=5 // pred_fallthru
        _
    $region6: #{tpu_custom_call.1} parent=1 // loop_footer
      %s20 = sadd.s32 1, %s16
    $region7: #{tpu_custom_call.1} parent=1 // loop_footer_branch
      %15 = sbr.rel target = $region3
    $region8: #{tpu_custom_call.1} parent=1 // loop_exit
      _
    %811 = vsyncpa [#allocation3], 1
    %s812 = scalar_lea.sflag [#allocation3], 1
    %813 = vsyncpa %s812, 1

</llo_original>
